<compile_context>
chip_gen: v7x
topology: tpu7x:2x2x1
jax: 0.10.0
libtpu: 0.0.40
codegen_flags: <defaults>
</compile_context>

<pallas_src>
import functools

import jax
import jax.numpy as jnp
from jax.experimental import pallas as pl
from jax.experimental.pallas import tpu as pltpu


def _softmax(x, axis):
    m = jnp.max(x, axis=axis, keepdims=True)
    e = jnp.exp(x - m)
    return e / jnp.sum(e, axis=axis, keepdims=True)


def untrimmednet_kernel(rgb_ref, flow_ref, w_rgb_ref, w_flow_ref, b_ref,
                        out_ref, *, K, T, blend):
    # rgb_ref / flow_ref : (n_clips*T, D)   row-batched features
    # w_rgb_ref / w_flow_ref : (D, C_pad)   packed [cls | att] weight slabs
    # b_ref : (1, C_pad)                    packed bias row
    # out_ref : (out_rows, C_pad)           out_rows >= n_clips (sublane pad)
    #
    # One fused logit slab per stream, summed:
    #   cols [0, K)      cls_rgb logits
    #   cols [K, 2K)     cls_flow logits
    #   col  2K          att_rgb logit
    #   col  2K+1        att_flow logit
    logits = (
        jnp.dot(rgb_ref[...], w_rgb_ref[...], preferred_element_type=jnp.float32)
        + jnp.dot(flow_ref[...], w_flow_ref[...], preferred_element_type=jnp.float32)
        + b_ref[...])                                      # (n*T, C_pad)

    n_clips = logits.shape[0] // T
    logits = logits.reshape(n_clips, T, logits.shape[1])   # T=8 is sublane-aligned

    # Class softmax over the class axis (PyTorch dim=1), per stream.
    c_rgb = _softmax(logits[..., 0:K], axis=-1)            # (n, T, K)
    c_flow = _softmax(logits[..., K:2 * K], axis=-1)       # (n, T, K)

    # Both attention softmaxes over time (PyTorch dim=0) in one 2-lane pass.
    la = logits[..., 2 * K:2 * K + 2]                      # (n, T, 2)
    a_sm = _softmax(la, axis=1)
    a = blend * a_sm[..., 0:1] + (1.0 - blend) * a_sm[..., 1:2]   # (n, T, 1)

    c = blend * c_rgb + (1.0 - blend) * c_flow              # (n, T, K)

    # Weighted time-pool: VPU multiply + sublane (XLU) reduce, no MXU round-trip.
    pred = jnp.sum(a * c, axis=1)                            # (n, K)

    # Full-tile zero store (unmasked), then drop pred into the corner.
    out_ref[...] = jnp.zeros_like(out_ref)
    out_ref[0:n_clips, 0:K] = pred


def _pack_weights(params, K, D, c_pad):
    """Pack the 4 linears into two (D, C_pad) slabs + one (1, C_pad) bias row.

    Column layout: [cls_rgb (K) | cls_flow (K) | att_rgb (1) | att_flow (1) | 0...].
    At real sizes keep D a multiple of 128 (pad these slabs offline) so the MXU
    contraction depth and the activation loads are lane-dense.
    """
    assert 2 * K + 2 <= c_pad, "packed column layout exceeds padded width"
    w_rgb = jnp.zeros((D, c_pad), jnp.float32)
    w_rgb = w_rgb.at[:, 0:K].set(params["wc_rgb"])            # rgb -> rgb classes
    w_rgb = w_rgb.at[:, 2 * K].set(params["wa_rgb"][0])       # rgb attention column
    w_flow = jnp.zeros((D, c_pad), jnp.float32)
    w_flow = w_flow.at[:, K:2 * K].set(params["wc_flow"])     # flow -> flow classes
    w_flow = w_flow.at[:, 2 * K + 1].set(params["wa_flow"][0])  # flow attention column
    b = jnp.zeros((1, c_pad), jnp.float32)
    b = b.at[0, 0:K].set(params["bc_rgb"][0])
    b = b.at[0, K:2 * K].set(params["bc_flow"][0])
    b = b.at[0, 2 * K].set(params["ba_rgb"][0, 0])
    b = b.at[0, 2 * K + 1].set(params["ba_flow"][0, 0])
    return w_rgb, w_flow, b


def _pick_clips_per_block(B, T, target_rows=256):
    """Clips per kernel step: aim for >=256 matmul rows (v6e/v7x MXU fill),
    fall back to the whole batch in one step when B is small."""
    want = max(1, target_rows // T)
    if B <= want:
        return B
    for d in range(min(B, want), 0, -1):
        # d must divide B; keep the output block sublane-aligned (d % 8 == 0).
        if B % d == 0 and d % 8 == 0:
            return d
    return B  # no aligned divisor: single step over the whole batch.


def untrimmednet_forward_batched(rgb, flow, params, *, blend=0.5):
    """rgb, flow: (B, T, D) float32 -> (B, K) predictions."""
    B, T, D = rgb.shape
    K = params["wc_rgb"].shape[1]
    c_pad = pl.cdiv(2 * K + 2, 128) * 128                  # lane-dense column width

    cpb = _pick_clips_per_block(B, T)                      # clips per kernel step
    num_blocks = B // cpb
    # Sublane-pad the per-step output rows so the store is a full (8,128) tile.
    out_rows = cpb if num_blocks > 1 else pl.cdiv(cpb, 8) * 8

    # Free reshapes (leading-dim merge); no HBM concat of rgb/flow.
    rgb2 = rgb.reshape(B * T, D).astype(jnp.float32)
    flow2 = flow.reshape(B * T, D).astype(jnp.float32)
    w_rgb, w_flow, b = _pack_weights(params, K, D, c_pad)

    kernel = functools.partial(untrimmednet_kernel, K=K, T=T, blend=blend)
    # With a single step the "parallel" megacore split is pure overhead; only
    # request it when there are many clip-blocks to share between TCs.
    semantics = ("parallel",) if num_blocks > 1 else ("arbitrary",)

    out = pl.pallas_call(
        kernel,
        out_shape=jax.ShapeDtypeStruct((num_blocks * out_rows, c_pad), jnp.float32),
        grid=(num_blocks,),
        in_specs=[
            pl.BlockSpec((cpb * T, D), lambda i: (i, 0)),     # rgb rows for this block
            pl.BlockSpec((cpb * T, D), lambda i: (i, 0)),     # flow rows for this block
            pl.BlockSpec((D, c_pad), lambda i: (0, 0)),       # packed rgb weights (resident)
            pl.BlockSpec((D, c_pad), lambda i: (0, 0)),       # packed flow weights (resident)
            pl.BlockSpec((1, c_pad), lambda i: (0, 0)),       # packed bias (resident)
        ],
        out_specs=pl.BlockSpec((out_rows, c_pad), lambda i: (i, 0)),
        compiler_params=pltpu.CompilerParams(dimension_semantics=semantics),
    )(rgb2, flow2, w_rgb, w_flow, b)

    preds = out.reshape(num_blocks, out_rows, c_pad)[:, :cpb, :K]
    return preds.reshape(B, K)


def untrimmednet_forward(rgb, flow, params, *, blend=0.5):
    """Single clip, matching the PyTorch module: (T, D), (T, D) -> (K,)."""
    return untrimmednet_forward_batched(rgb[None], flow[None], params,
                                        blend=blend)[0]


def reference_forward(rgb, flow, params):
    """Pure-JAX reproduction of the PyTorch module semantics (single clip)."""
    blend = 0.5
    la_rgb = rgb @ params["wa_rgb"].T + params["ba_rgb"][0]    # (T, 1)
    la_flow = flow @ params["wa_flow"].T + params["ba_flow"][0]
    a_rgb = jax.nn.softmax(la_rgb, axis=0)
    a_flow = jax.nn.softmax(la_flow, axis=0)
    lc_rgb = rgb @ params["wc_rgb"] + params["bc_rgb"][0]      # (T, K)
    lc_flow = flow @ params["wc_flow"] + params["bc_flow"][0]
    c_rgb = jax.nn.softmax(lc_rgb, axis=1)
    c_flow = jax.nn.softmax(lc_flow, axis=1)
    a = blend * a_rgb + (1 - blend) * a_flow
    c = blend * c_rgb + (1 - blend) * c_flow
    cas = a * c
    return jnp.sum(cas, axis=0)                                # (K,)


def init_params(key, D, K):
    """Deterministic init mimicking PyTorch nn.Linear default U[-1/sqrt(D), 1/sqrt(D)]."""
    ks = jax.random.split(key, 8)
    bound = 1.0 / jnp.sqrt(jnp.float32(D))
    u = lambda k, shape: jax.random.uniform(k, shape, jnp.float32, -bound, bound)
    return {
        "wa_rgb": u(ks[0], (1, D)), "ba_rgb": u(ks[1], (1, 1)),
        "wa_flow": u(ks[2], (1, D)), "ba_flow": u(ks[3], (1, 1)),
        "wc_rgb": u(ks[4], (D, K)), "bc_rgb": u(ks[5], (1, K)),
        "wc_flow": u(ks[6], (D, K)), "bc_flow": u(ks[7], (1, K)),
    }


if __name__ == "__main__":
    B, T, D, K = 4, 8, 32, 4   # batch of clips, seq=8 segments, opt.dim=32, opt.n_classes=4

    key = jax.random.PRNGKey(0)
    k_rgb, k_flow, k_params = jax.random.split(key, 3)
    rgb = jax.random.normal(k_rgb, (B, T, D), jnp.float32)
    flow = jax.random.normal(k_flow, (B, T, D), jnp.float32)
    params = init_params(k_params, D, K)

    # Batched kernel path: the whole batch is row-folded into one kernel step.
    pred_batched = jax.block_until_ready(
        untrimmednet_forward_batched(rgb, flow, params))
    assert pred_batched.shape == (B, K)

    # Single-clip path — same semantics as the original PyTorch forward.
    pred_single = jax.block_until_ready(
        untrimmednet_forward(rgb[0], flow[0], params))
    assert pred_single.shape == (K,)

    ref = jnp.stack([reference_forward(rgb[i], flow[i], params)
                     for i in range(B)])
    assert jnp.allclose(pred_batched, ref, atol=1e-5, rtol=1e-5), (pred_batched, ref)
    assert jnp.allclose(pred_single, ref[0], atol=1e-5, rtol=1e-5), (pred_single, ref[0])

    print("KERNEL_OK")
</pallas_src>

<mosaic_0001>
module attributes {stable_mosaic.version = 11 : i64} {
  func.func @untrimmednet_kernel(%arg0: i32, %arg1: memref<32x32xf32, #tpu.memory_space<vmem>>, %arg2: memref<32x32xf32, #tpu.memory_space<vmem>>, %arg3: memref<32x128xf32, #tpu.memory_space<vmem>>, %arg4: memref<32x128xf32, #tpu.memory_space<vmem>>, %arg5: memref<1x128xf32, #tpu.memory_space<vmem>>, %arg6: memref<8x128xf32, #tpu.memory_space<vmem>>) attributes {dimension_semantics = [#tpu.dimension_semantics<arbitrary>], iteration_bounds = array<i64: 1>, scalar_prefetch = 0 : i64, scratch_operands = 0 : i64, tpu.core_type = #tpu.core_type<tc>, window_params = [{transform_indices = @transform_0, window_bounds = array<i64: 32, 32>}, {transform_indices = @transform_1, window_bounds = array<i64: 32, 32>}, {pipeline_mode = #tpu.pipeline_mode<synchronous>, transform_indices = @transform_2, window_bounds = array<i64: 32, 128>}, {pipeline_mode = #tpu.pipeline_mode<synchronous>, transform_indices = @transform_3, window_bounds = array<i64: 32, 128>}, {pipeline_mode = #tpu.pipeline_mode<synchronous>, transform_indices = @transform_4, window_bounds = array<i64: 1, 128>}, {transform_indices = @transform_5, window_bounds = array<i64: 8, 128>}]} {
    %c0 = arith.constant 0 : index
    %c0_0 = arith.constant 0 : index
    %0 = vector.load %arg1[%c0, %c0_0] : memref<32x32xf32, #tpu.memory_space<vmem>>, vector<32x32xf32>
    %c0_1 = arith.constant 0 : index
    %c0_2 = arith.constant 0 : index
    %1 = vector.load %arg3[%c0_1, %c0_2] : memref<32x128xf32, #tpu.memory_space<vmem>>, vector<32x128xf32>
    %cst = arith.constant dense<0.000000e+00> : vector<32x128xf32>
    %2 = tpu.matmul %0, %1, %cst {dimension_numbers = #tpu.dot_dimension_numbers<[1], [0], [0], [1], [0, 0, 1, 1], [], []>} : vector<32x32xf32>, vector<32x128xf32>, vector<32x128xf32> -> vector<32x128xf32>
    %c0_3 = arith.constant 0 : index
    %c0_4 = arith.constant 0 : index
    %3 = vector.load %arg2[%c0_3, %c0_4] : memref<32x32xf32, #tpu.memory_space<vmem>>, vector<32x32xf32>
    %c0_5 = arith.constant 0 : index
    %c0_6 = arith.constant 0 : index
    %4 = vector.load %arg4[%c0_5, %c0_6] : memref<32x128xf32, #tpu.memory_space<vmem>>, vector<32x128xf32>
    %cst_7 = arith.constant dense<0.000000e+00> : vector<32x128xf32>
    %5 = tpu.matmul %3, %4, %cst_7 {dimension_numbers = #tpu.dot_dimension_numbers<[1], [0], [0], [1], [0, 0, 1, 1], [], []>} : vector<32x32xf32>, vector<32x128xf32>, vector<32x128xf32> -> vector<32x128xf32>
    %6 = arith.addf %2, %5 : vector<32x128xf32>
    %c0_8 = arith.constant 0 : index
    %c0_9 = arith.constant 0 : index
    %7 = vector.load %arg5[%c0_8, %c0_9] : memref<1x128xf32, #tpu.memory_space<vmem>>, vector<1x128xf32>
    %8 = vector.broadcast %7 : vector<1x128xf32> to vector<32x128xf32>
    %9 = arith.addf %6, %8 : vector<32x128xf32>
    %10 = vector.shape_cast %9 : vector<32x128xf32> to vector<4x8x128xf32>
    %11 = vector.extract_strided_slice %10 {offsets = [0, 0, 0], sizes = [4, 8, 4], strides = [1, 1, 1]} : vector<4x8x128xf32> to vector<4x8x4xf32>
    %cst_10 = arith.constant dense<0xFF800000> : vector<4x8xf32>
    %12 = vector.multi_reduction <maximumf>, %11, %cst_10 [2] : vector<4x8x4xf32> to vector<4x8xf32>
    %13 = vector.shape_cast %12 : vector<4x8xf32> to vector<4x8x1xf32>
    %14 = vector.broadcast %13 : vector<4x8x1xf32> to vector<4x8x4xf32>
    %15 = arith.subf %11, %14 : vector<4x8x4xf32>
    %16 = math.exp %15 : vector<4x8x4xf32>
    %cst_11 = arith.constant dense<0.000000e+00> : vector<4x8xf32>
    %17 = vector.multi_reduction <add>, %16, %cst_11 [2] : vector<4x8x4xf32> to vector<4x8xf32>
    %18 = vector.shape_cast %17 : vector<4x8xf32> to vector<4x8x1xf32>
    %19 = vector.broadcast %18 : vector<4x8x1xf32> to vector<4x8x4xf32>
    %20 = arith.divf %16, %19 : vector<4x8x4xf32>
    %21 = vector.extract_strided_slice %10 {offsets = [0, 0, 4], sizes = [4, 8, 4], strides = [1, 1, 1]} : vector<4x8x128xf32> to vector<4x8x4xf32>
    %cst_12 = arith.constant dense<0xFF800000> : vector<4x8xf32>
    %22 = vector.multi_reduction <maximumf>, %21, %cst_12 [2] : vector<4x8x4xf32> to vector<4x8xf32>
    %23 = vector.shape_cast %22 : vector<4x8xf32> to vector<4x8x1xf32>
    %24 = vector.broadcast %23 : vector<4x8x1xf32> to vector<4x8x4xf32>
    %25 = arith.subf %21, %24 : vector<4x8x4xf32>
    %26 = math.exp %25 : vector<4x8x4xf32>
    %cst_13 = arith.constant dense<0.000000e+00> : vector<4x8xf32>
    %27 = vector.multi_reduction <add>, %26, %cst_13 [2] : vector<4x8x4xf32> to vector<4x8xf32>
    %28 = vector.shape_cast %27 : vector<4x8xf32> to vector<4x8x1xf32>
    %29 = vector.broadcast %28 : vector<4x8x1xf32> to vector<4x8x4xf32>
    %30 = arith.divf %26, %29 : vector<4x8x4xf32>
    %31 = vector.extract_strided_slice %10 {offsets = [0, 0, 8], sizes = [4, 8, 2], strides = [1, 1, 1]} : vector<4x8x128xf32> to vector<4x8x2xf32>
    %cst_14 = arith.constant dense<0xFF800000> : vector<4x2xf32>
    %32 = vector.multi_reduction <maximumf>, %31, %cst_14 [1] : vector<4x8x2xf32> to vector<4x2xf32>
    %33 = vector.shape_cast %32 : vector<4x2xf32> to vector<4x1x2xf32>
    %34 = vector.broadcast %33 : vector<4x1x2xf32> to vector<4x8x2xf32>
    %35 = arith.subf %31, %34 : vector<4x8x2xf32>
    %36 = math.exp %35 : vector<4x8x2xf32>
    %cst_15 = arith.constant dense<0.000000e+00> : vector<4x2xf32>
    %37 = vector.multi_reduction <add>, %36, %cst_15 [1] : vector<4x8x2xf32> to vector<4x2xf32>
    %38 = vector.shape_cast %37 : vector<4x2xf32> to vector<4x1x2xf32>
    %39 = vector.broadcast %38 : vector<4x1x2xf32> to vector<4x8x2xf32>
    %40 = arith.divf %36, %39 : vector<4x8x2xf32>
    %41 = vector.extract_strided_slice %40 {offsets = [0, 0, 0], sizes = [4, 8, 1], strides = [1, 1, 1]} : vector<4x8x2xf32> to vector<4x8x1xf32>
    %cst_16 = arith.constant 5.000000e-01 : f32
    %42 = vector.broadcast %cst_16 : f32 to vector<4x8x1xf32>
    %43 = arith.mulf %42, %41 : vector<4x8x1xf32>
    %44 = vector.extract_strided_slice %40 {offsets = [0, 0, 1], sizes = [4, 8, 1], strides = [1, 1, 1]} : vector<4x8x2xf32> to vector<4x8x1xf32>
    %cst_17 = arith.constant 5.000000e-01 : f32
    %45 = vector.broadcast %cst_17 : f32 to vector<4x8x1xf32>
    %46 = arith.mulf %45, %44 : vector<4x8x1xf32>
    %47 = arith.addf %43, %46 : vector<4x8x1xf32>
    %cst_18 = arith.constant 5.000000e-01 : f32
    %48 = vector.broadcast %cst_18 : f32 to vector<4x8x4xf32>
    %49 = arith.mulf %48, %20 : vector<4x8x4xf32>
    %cst_19 = arith.constant 5.000000e-01 : f32
    %50 = vector.broadcast %cst_19 : f32 to vector<4x8x4xf32>
    %51 = arith.mulf %50, %30 : vector<4x8x4xf32>
    %52 = arith.addf %49, %51 : vector<4x8x4xf32>
    %53 = vector.broadcast %47 : vector<4x8x1xf32> to vector<4x8x4xf32>
    %54 = arith.mulf %53, %52 : vector<4x8x4xf32>
    %cst_20 = arith.constant dense<0.000000e+00> : vector<4x4xf32>
    %55 = vector.multi_reduction <add>, %54, %cst_20 [1] : vector<4x8x4xf32> to vector<4x4xf32>
    %cst_21 = arith.constant 0.000000e+00 : f32
    %56 = vector.broadcast %cst_21 : f32 to vector<8x128xf32>
    %c0_22 = arith.constant 0 : index
    %c0_23 = arith.constant 0 : index
    %57 = vector.load %arg6[%c0_22, %c0_23] : memref<8x128xf32, #tpu.memory_space<vmem>>, vector<8x128xf32>
    tpu.vector_store %arg6[%c0_22, %c0_23], %56 {strides = array<i32>} : memref<8x128xf32, #tpu.memory_space<vmem>>, vector<8x128xf32>,
    %c0_24 = arith.constant 0 : index
    %c0_25 = arith.constant 0 : index
    %58 = vector.load %arg6[%c0_24, %c0_25] : memref<8x128xf32, #tpu.memory_space<vmem>>, vector<4x4xf32>
    tpu.vector_store %arg6[%c0_24, %c0_25], %55 {strides = array<i32>} : memref<8x128xf32, #tpu.memory_space<vmem>>, vector<4x4xf32>,
    return
  }
  func.func @transform_0(%arg0: i32) -> (i32, i32) {
    %c0_i32 = arith.constant 0 : i32
    %c0_i32_0 = arith.constant 0 : i32
    return %arg0, %c0_i32 : i32, i32
  }
  func.func @transform_1(%arg0: i32) -> (i32, i32) {
    %c0_i32 = arith.constant 0 : i32
    %c0_i32_0 = arith.constant 0 : i32
    return %arg0, %c0_i32 : i32, i32
  }
  func.func @transform_2(%arg0: i32) -> (i32, i32) {
    %c0_i32 = arith.constant 0 : i32
    %c0_i32_0 = arith.constant 0 : i32
    %c0_i32_1 = arith.constant 0 : i32
    return %c0_i32, %c0_i32_0 : i32, i32
  }
  func.func @transform_3(%arg0: i32) -> (i32, i32) {
    %c0_i32 = arith.constant 0 : i32
    %c0_i32_0 = arith.constant 0 : i32
    %c0_i32_1 = arith.constant 0 : i32
    return %c0_i32, %c0_i32_0 : i32, i32
  }
  func.func @transform_4(%arg0: i32) -> (i32, i32) {
    %c0_i32 = arith.constant 0 : i32
    %c0_i32_0 = arith.constant 0 : i32
    %c0_i32_1 = arith.constant 0 : i32
    return %c0_i32, %c0_i32_0 : i32, i32
  }
  func.func @transform_5(%arg0: i32) -> (i32, i32) {
    %c0_i32 = arith.constant 0 : i32
    %c0_i32_0 = arith.constant 0 : i32
    return %arg0, %c0_i32 : i32, i32
  }
}

</mosaic_0001>

<llo_original>
// kernel: tpu_custom_call.1
$region0: #{tpu_custom_call.1}
  #allocation0 [shape = 'u32[]', space=smem, size = 0x4, offset = 0x4, fixed_abs, tag = 'smem constant byte address 0x4 - core index']
  #allocation1 [shape = 'u32[144,128]{1,0:T(1,128)}', space=vmem, size = 0x12000, scoped, tag = 'internal scratch']
  %s0 = inlined_call_operand.hbm [shape: f32[32,32], index: 0, kind: input, shape index: {}]
  %s1 = inlined_call_operand.hbm [shape: f32[32,32], index: 1, kind: input, shape index: {}]
  %s2 = inlined_call_operand.hbm [shape: f32[32,128], index: 2, kind: input, shape index: {}]
  %s3 = inlined_call_operand.hbm [shape: f32[32,128], index: 3, kind: input, shape index: {}]
  %s4 = inlined_call_operand.vmem [shape: f32[1,128], index: 4, kind: input, shape index: {}]
  %s5 = inlined_call_operand.hbm [shape: f32[8,128], index: 5, kind: output, shape index: {}]
  %s6 = sld [smem:[#allocation0]]
  $region46: #{tpu_custom_call.1} parent=0
    _
  %s8 = ssub.s32 1, %s6
  %s9 = scalar_select 0, %s8, %s6
  $region1: #{tpu_custom_call.1} parent=0
    #allocation2 [shape = 'u8[16384]{0}', space=vmem, size = 0x4000, scoped, tag = 'input window, operand 0, single buffered']
    #allocation3 [shape = 's32[1]{0}', space=sflag, size = 0x4, scoped, tag = 'scoped memory for tpu_custom_call.1']
    #allocation4 [shape = 's32[1]{0}', space=sflag, size = 0x4, scoped, tag = 'scoped memory for tpu_custom_call.1']
    #allocation5 [shape = 'u8[16384]{0}', space=vmem, size = 0x4000, scoped, tag = 'input window, operand 1, single buffered']
    #allocation6 [shape = 's32[1]{0}', space=sflag, size = 0x4, scoped, tag = 'scoped memory for tpu_custom_call.1']
    #allocation7 [shape = 'u8[16384]{0}', space=vmem, size = 0x4000, scoped, tag = 'input window, operand 2, single buffered']
    #allocation8 [shape = 'u8[16384]{0}', space=vmem, size = 0x4000, scoped, tag = 'input window, operand 3, single buffered']
    #allocation9 [shape = 's32[1]{0}', space=sflag, size = 0x4, scoped, tag = 'scoped memory for tpu_custom_call.1']
    #allocation10 [shape = 'u8[4096]{0}', space=vmem, size = 0x1000, scoped, tag = 'output window, operand 0, single buffered']
    %10 = vsyncpa [#allocation3], 0
    %11 = vsyncpa [#allocation6], 0
    %12 = vsyncpa [#allocation9], 0
    %13 = vsyncpa [#allocation4], 0
    // Predicated region
    $region2: #{tpu_custom_call.1} parent=1 // pred_check
      _
    $region3: #{tpu_custom_call.1} parent=1 // pred_check_branch
      %15 = sbr.rel (0) target = $region5
    $region4: #{tpu_custom_call.1} parent=1 // pred_region
      %s17 = ssub.s32 512, 512
      %18 = vsyncadd [#allocation3], %s17
      %s19 = sshll.u32 [#allocation2], 4
      %s20 = int_to_ptr.vmem [resolvable:$true] %s19
      %25 = dma.hbm_to_vmem [thread:$0]  %s0, 512, %s20, [#allocation3], 128, 128, 8
    $region5: #{tpu_custom_call.1} parent=1 // pred_fallthru
      _
    // Predicated region
    $region6: #{tpu_custom_call.1} parent=1 // pred_check
      _
    $region7: #{tpu_custom_call.1} parent=1 // pred_check_branch
      %27 = sbr.rel (0) target = $region9
    $region8: #{tpu_custom_call.1} parent=1 // pred_region
      %s29 = ssub.s32 512, 512
      %30 = vsyncadd [#allocation6], %s29
      %s31 = sshll.u32 [#allocation5], 4
      %s32 = int_to_ptr.vmem [resolvable:$true] %s31
      %37 = dma.hbm_to_vmem [thread:$0]  %s1, 512, %s32, [#allocation6], 128, 128, 8
    $region9: #{tpu_custom_call.1} parent=1 // pred_fallthru
      _
    // Predicated region
    $region10: #{tpu_custom_call.1} parent=1 // pred_check
      _
    $region11: #{tpu_custom_call.1} parent=1 // pred_check_branch
      %39 = sbr.rel (0) target = $region13
    $region12: #{tpu_custom_call.1} parent=1 // pred_region
      %s41 = ssub.s32 512, 512
      %42 = vsyncadd [#allocation6], %s41
      %s43 = sshll.u32 [#allocation7], 4
      %s44 = int_to_ptr.vmem [resolvable:$true] %s43
      %49 = dma.hbm_to_vmem [thread:$0]  %s2, 512, %s44, [#allocation6], 128, 128, 8
    $region13: #{tpu_custom_call.1} parent=1 // pred_fallthru
      _
    // Predicated region
    $region14: #{tpu_custom_call.1} parent=1 // pred_check
      _
    $region15: #{tpu_custom_call.1} parent=1 // pred_check_branch
      %51 = sbr.rel (0) target = $region17
    $region16: #{tpu_custom_call.1} parent=1 // pred_region
      %s53 = ssub.s32 512, 512
      %54 = vsyncadd [#allocation9], %s53
      %s55 = sshll.u32 [#allocation8], 4
      %s56 = int_to_ptr.vmem [resolvable:$true] %s55
      %61 = dma.hbm_to_vmem [thread:$0]  %s3, 512, %s56, [#allocation9], 128, 128, 8
    $region17: #{tpu_custom_call.1} parent=1 // pred_fallthru
      _
    // Predicated region
    $region18: #{tpu_custom_call.1} parent=1 // pred_check
      _
    $region19: #{tpu_custom_call.1} parent=1 // pred_check_branch
      %63 = sbr.rel (0) target = $region21
    $region20: #{tpu_custom_call.1} parent=1 // pred_region
      _
    $region21: #{tpu_custom_call.1} parent=1 // pred_fallthru
      _
    // Predicated region
    $region22: #{tpu_custom_call.1} parent=1 // pred_check
      _
    $region23: #{tpu_custom_call.1} parent=1 // pred_check_branch
      %65 = sbr.rel (0) target = $region25
    $region24: #{tpu_custom_call.1} parent=1 // pred_region
      %66 = dma.done [#allocation3], 512
    $region25: #{tpu_custom_call.1} parent=1 // pred_fallthru
      _
    // Predicated region
    $region26: #{tpu_custom_call.1} parent=1 // pred_check
      _
    $region27: #{tpu_custom_call.1} parent=1 // pred_check_branch
      %68 = sbr.rel (0) target = $region29
    $region28: #{tpu_custom_call.1} parent=1 // pred_region
      %69 = dma.done [#allocation6], 512
    $region29: #{tpu_custom_call.1} parent=1 // pred_fallthru
      _
    // Predicated region
    $region30: #{tpu_custom_call.1} parent=1 // pred_check
      _
    $region31: #{tpu_custom_call.1} parent=1 // pred_check_branch
      %71 = sbr.rel (0) target = $region33
    $region32: #{tpu_custom_call.1} parent=1 // pred_region
      %72 = dma.done [#allocation6], 512
    $region33: #{tpu_custom_call.1} parent=1 // pred_fallthru
      _
    // Predicated region
    $region34: #{tpu_custom_call.1} parent=1 // pred_check
      _
    $region35: #{tpu_custom_call.1} parent=1 // pred_check_branch
      %74 = sbr.rel (0) target = $region37
    $region36: #{tpu_custom_call.1} parent=1 // pred_region
      %75 = dma.done [#allocation9], 512
    $region37: #{tpu_custom_call.1} parent=1 // pred_fallthru
      _
    %v76 = vld [vmem:[#allocation2] sm:$0xff]
    %v77 = vld [vmem:[#allocation2 + $0x8] sm:$0xff]
    %v78 = vld [vmem:[#allocation2 + $0x10] sm:$0xff]
    %v79 = vld [vmem:[#allocation2 + $0x18] sm:$0xff]
    %v80 = vld [vmem:[#allocation7] sm:$0xff]
    %v81 = vld [vmem:[#allocation7 + $0x8] sm:$0xff]
    %v82 = vld [vmem:[#allocation7 + $0x10] sm:$0xff]
    %v83 = vld [vmem:[#allocation7 + $0x18] sm:$0xff]
    %v84 = vld [vmem:[#allocation5] sm:$0xff]
    %v85 = vld [vmem:[#allocation5 + $0x8] sm:$0xff]
    %v86 = vld [vmem:[#allocation5 + $0x10] sm:$0xff]
    %v87 = vld [vmem:[#allocation5 + $0x18] sm:$0xff]
    %v88 = vld [vmem:[#allocation8] sm:$0xff]
    %v89 = vld [vmem:[#allocation8 + $0x8] sm:$0xff]
    %v90 = vld [vmem:[#allocation8 + $0x10] sm:$0xff]
    %v91 = vld [vmem:[#allocation8 + $0x18] sm:$0xff]
    %vm92 = vcmask 261120
    %v94 = vsel %vm92, %v84, 0
    %v97 = vsel %vm92, %v85, 0
    %v100 = vsel %vm92, %v86, 0
    %v103 = vsel %vm92, %v87, 0
    %105 = vmatprep.subr.mxu0 0.0
    %106 = vmatpush1.msra.mxu0 %v88
    %107 = vmatprep.subr.mxu0 0.0
    %108 = vmatpush1.msra.mxu0 %v89
    %109 = vmatprep.subr.mxu0 0.0
    %110 = vmatpush1.msra.mxu0 %v90
    %111 = vmatprep.subr.mxu0 0.0
    %112 = vmatpush1.msra.mxu0 %v91
    %113 = vmatprep.subr.mxu0 0.0
    %114 = vmatpush1.msra.mxu0 0.0
    %115 = vmatprep.subr.mxu0 0.0
    %116 = vmatpush1.msra.mxu0 0.0
    %117 = vmatprep.subr.mxu0 0.0
    %118 = vmatpush1.msra.mxu0 0.0
    %119 = vmatprep.subr.mxu0 0.0
    %120 = vmatpush1.msra.mxu0 0.0
    %121 = vmatprep.subr.mxu0 0.0
    %122 = vmatpush1.msra.mxu0 0.0
    %123 = vmatprep.subr.mxu0 0.0
    %124 = vmatpush1.msra.mxu0 0.0
    %125 = vmatprep.subr.mxu0 0.0
    %126 = vmatpush1.msra.mxu0 0.0
    %127 = vmatprep.subr.mxu0 0.0
    %128 = vmatpush1.msra.mxu0 0.0
    %129 = vmatprep.subr.mxu0 0.0
    %130 = vmatpush1.msra.mxu0 0.0
    %131 = vmatprep.subr.mxu0 0.0
    %132 = vmatpush1.msra.mxu0 0.0
    %133 = vmatprep.subr.mxu0 0.0
    %134 = vmatpush1.msra.mxu0 0.0
    %135 = vmatprep.subr.mxu0 0.0
    %136 = vmatpush1.msra.mxu0 0.0
    %137 = vmatprep.subr.mxu0 0.0
    %138 = vmatpush1.msra.mxu0 0.0
    %139 = vmatprep.subr.mxu0 0.0
    %140 = vmatpush1.msra.mxu0 0.0
    %141 = vmatprep.subr.mxu0 0.0
    %142 = vmatpush1.msra.mxu0 0.0
    %143 = vmatprep.subr.mxu0 0.0
    %144 = vmatpush1.msra.mxu0 0.0
    %145 = vmatprep.subr.mxu0 0.0
    %146 = vmatpush1.msra.mxu0 0.0
    %147 = vmatprep.subr.mxu0 0.0
    %148 = vmatpush1.msra.mxu0 0.0
    %149 = vmatprep.subr.mxu0 0.0
    %150 = vmatpush1.msra.mxu0 0.0
    %151 = vmatprep.subr.mxu0 0.0
    %152 = vmatpush1.msra.mxu0 0.0
    %153 = vmatprep.subr.mxu0 0.0
    %154 = vmatpush1.msra.mxu0 0.0
    %155 = vmatprep.subr.mxu0 0.0
    %156 = vmatpush1.msra.mxu0 0.0
    %157 = vmatprep.subr.mxu0 0.0
    %158 = vmatpush1.msra.mxu0 0.0
    %159 = vmatprep.subr.mxu0 0.0
    %160 = vmatpush1.msra.mxu0 0.0
    %161 = vmatprep.subr.mxu0 0.0
    %162 = vmatpush1.msra.mxu0 0.0
    %163 = vmatprep.subr.mxu0 0.0
    %164 = vmatpush1.msra.mxu0 0.0
    %165 = vmatprep.subr.mxu0 0.0
    %166 = vmatpush1.msra.mxu0 0.0
    %167 = vmatprep.subr.mxu0 0.0
    %168 = vmatpush1.msra.mxu0 0.0
    %169 = vmatprep.mubr.f32.mxu0 0.0
    %170 = vmatmul.mubr.f32.gmra.mrb[0].mxu0 %v94
    %v171 = vpop.f32.mrb[0].mxu0
    %v172 = vadd.f32 0.0, %v171
    %v173 = vpop.f32.mrb[0].mxu0
    %174 = vmatprep.mubr.f32.mxu0 0.0
    %175 = vmatmul.mubr.f32.gmra.mrb[0].mxu0 %v97
    %v176 = vpop.f32.mrb[0].mxu0
    %v177 = vadd.f32 0.0, %v176
    %v178 = vpop.f32.mrb[0].mxu0
    %179 = vmatprep.mubr.f32.mxu0 0.0
    %180 = vmatmul.mubr.f32.gmra.mrb[0].mxu0 %v100
    %v181 = vpop.f32.mrb[0].mxu0
    %v182 = vadd.f32 0.0, %v181
    %v183 = vpop.f32.mrb[0].mxu0
    %184 = vmatprep.mubr.f32.mxu0 0.0
    %185 = vmatmul.mubr.f32.gmra.mrb[0].mxu0 %v103
    %v186 = vpop.f32.mrb[0].mxu0
    %v187 = vadd.f32 0.0, %v186
    %v188 = vpop.f32.mrb[0].mxu0
    %189 = vdwg.mxu0
    %v191 = vsel %vm92, %v76, 0
    %v194 = vsel %vm92, %v77, 0
    %v197 = vsel %vm92, %v78, 0
    %v200 = vsel %vm92, %v79, 0
    %202 = vmatprep.subr.mxu0 0.0
    %203 = vmatpush1.msra.mxu0 %v80
    %204 = vmatprep.subr.mxu0 0.0
    %205 = vmatpush1.msra.mxu0 %v81
    %206 = vmatprep.subr.mxu0 0.0
    %207 = vmatpush1.msra.mxu0 %v82
    %208 = vmatprep.subr.mxu0 0.0
    %209 = vmatpush1.msra.mxu0 %v83
    %210 = vmatprep.subr.mxu0 0.0
    %211 = vmatpush1.msra.mxu0 0.0
    %212 = vmatprep.subr.mxu0 0.0
    %213 = vmatpush1.msra.mxu0 0.0
    %214 = vmatprep.subr.mxu0 0.0
    %215 = vmatpush1.msra.mxu0 0.0
    %216 = vmatprep.subr.mxu0 0.0
    %217 = vmatpush1.msra.mxu0 0.0
    %218 = vmatprep.subr.mxu0 0.0
    %219 = vmatpush1.msra.mxu0 0.0
    %220 = vmatprep.subr.mxu0 0.0
    %221 = vmatpush1.msra.mxu0 0.0
    %222 = vmatprep.subr.mxu0 0.0
    %223 = vmatpush1.msra.mxu0 0.0
    %224 = vmatprep.subr.mxu0 0.0
    %225 = vmatpush1.msra.mxu0 0.0
    %226 = vmatprep.subr.mxu0 0.0
    %227 = vmatpush1.msra.mxu0 0.0
    %228 = vmatprep.subr.mxu0 0.0
    %229 = vmatpush1.msra.mxu0 0.0
    %230 = vmatprep.subr.mxu0 0.0
    %231 = vmatpush1.msra.mxu0 0.0
    %232 = vmatprep.subr.mxu0 0.0
    %233 = vmatpush1.msra.mxu0 0.0
    %234 = vmatprep.subr.mxu0 0.0
    %235 = vmatpush1.msra.mxu0 0.0
    %236 = vmatprep.subr.mxu0 0.0
    %237 = vmatpush1.msra.mxu0 0.0
    %238 = vmatprep.subr.mxu0 0.0
    %239 = vmatpush1.msra.mxu0 0.0
    %240 = vmatprep.subr.mxu0 0.0
    %241 = vmatpush1.msra.mxu0 0.0
    %242 = vmatprep.subr.mxu0 0.0
    %243 = vmatpush1.msra.mxu0 0.0
    %244 = vmatprep.subr.mxu0 0.0
    %245 = vmatpush1.msra.mxu0 0.0
    %246 = vmatprep.subr.mxu0 0.0
    %247 = vmatpush1.msra.mxu0 0.0
    %248 = vmatprep.subr.mxu0 0.0
    %249 = vmatpush1.msra.mxu0 0.0
    %250 = vmatprep.subr.mxu0 0.0
    %251 = vmatpush1.msra.mxu0 0.0
    %252 = vmatprep.subr.mxu0 0.0
    %253 = vmatpush1.msra.mxu0 0.0
    %254 = vmatprep.subr.mxu0 0.0
    %255 = vmatpush1.msra.mxu0 0.0
    %256 = vmatprep.subr.mxu0 0.0
    %257 = vmatpush1.msra.mxu0 0.0
    %258 = vmatprep.subr.mxu0 0.0
    %259 = vmatpush1.msra.mxu0 0.0
    %260 = vmatprep.subr.mxu0 0.0
    %261 = vmatpush1.msra.mxu0 0.0
    %262 = vmatprep.subr.mxu0 0.0
    %263 = vmatpush1.msra.mxu0 0.0
    %264 = vmatprep.subr.mxu0 0.0
    %265 = vmatpush1.msra.mxu0 0.0
    %266 = vmatprep.mubr.f32.mxu0 0.0
    %267 = vmatmul.mubr.f32.gmra.mrb[0].mxu0 %v191
    %v268 = vpop.f32.mrb[0].mxu0
    %v269 = vadd.f32 %v172, %v268
    %v270 = vpop.f32.mrb[0].mxu0
    %271 = vmatprep.mubr.f32.mxu0 0.0
    %272 = vmatmul.mubr.f32.gmra.mrb[0].mxu0 %v194
    %v273 = vpop.f32.mrb[0].mxu0
    %v274 = vadd.f32 %v177, %v273
    %v275 = vpop.f32.mrb[0].mxu0
    %276 = vmatprep.mubr.f32.mxu0 0.0
    %277 = vmatmul.mubr.f32.gmra.mrb[0].mxu0 %v197
    %v278 = vpop.f32.mrb[0].mxu0
    %v279 = vadd.f32 %v182, %v278
    %v280 = vpop.f32.mrb[0].mxu0
    %281 = vmatprep.mubr.f32.mxu0 0.0
    %282 = vmatmul.mubr.f32.gmra.mrb[0].mxu0 %v200
    %v283 = vpop.f32.mrb[0].mxu0
    %v284 = vadd.f32 %v187, %v283
    %v285 = vpop.f32.mrb[0].mxu0
    %286 = vdwg.mxu0
    %v287 = vld [vmem:[%s4] sm:$0x1]
    %v289 = vlaneseq
    %v290 = vshrl.u32 %v289, 7
    %v291 = vsub.s32 0, %v290
    %v292 = vrot.slane %v287, %v291
    %v294 = vadd.f32 %v269, %v292
    %v295 = vadd.f32 %v274, %v292
    %v296 = vadd.f32 %v279, %v292
    %v297 = vadd.f32 %v284, %v292
    %vm298 = vcmask 31744
    %v299 = vsel %vm298, %v294, -inf
    %300 = vmax.xlane.f32.xlu0 %v299
    %v301 = vpop.xlane.xlu0 %300
    %v302 = vsel %vm298, %v295, -inf
    %303 = vmax.xlane.f32.xlu0 %v302
    %v304 = vpop.xlane.xlu0 %303
    %v305 = vsel %vm298, %v296, -inf
    %306 = vmax.xlane.f32.xlu0 %v305
    %v307 = vpop.xlane.xlu0 %306
    %v308 = vsel %vm298, %v297, -inf
    %309 = vmax.xlane.f32.xlu0 %v308
    %v310 = vpop.xlane.xlu0 %309
    %v311 = vsub.f32 %v294, %v301
    %v312 = vsub.f32 %v295, %v304
    %v313 = vsub.f32 %v296, %v307
    %v314 = vsub.f32 %v297, %v310
    %v315 = vmul.f32 %v311, 1.442695
    %v316 = vpow.pop %v315
    %v317 = vmul.f32 %v312, 1.442695
    %v318 = vpow.pop %v317
    %v319 = vmul.f32 %v313, 1.442695
    %v320 = vpow.pop %v319
    %v321 = vmul.f32 %v314, 1.442695
    %v322 = vpow.pop %v321
    %v323 = vsel %vm298, %v316, 0.0
    %324 = vadd.xlane.f32.xlu0 %v323
    %v325 = vpop.xlane.xlu0 %324
    %v326 = vsel %vm298, %v318, 0.0
    %327 = vadd.xlane.f32.xlu0 %v326
    %v328 = vpop.xlane.xlu0 %327
    %v329 = vsel %vm298, %v320, 0.0
    %330 = vadd.xlane.f32.xlu0 %v329
    %v331 = vpop.xlane.xlu0 %330
    %v332 = vsel %vm298, %v322, 0.0
    %333 = vadd.xlane.f32.xlu0 %v332
    %v334 = vpop.xlane.xlu0 %333
    %v335 = vrcp.pop %v325
    %v336 = vmul.f32 %v316, %v335
    %v337 = vrcp.pop %v328
    %v338 = vmul.f32 %v318, %v337
    %v339 = vrcp.pop %v331
    %v340 = vmul.f32 %v320, %v339
    %v341 = vrcp.pop %v334
    %v342 = vmul.f32 %v322, %v341
    %vm343 = vcmask 64544
    %v344 = vsel %vm343, %v294, -inf
    %345 = vmax.xlane.f32.xlu0 %v344
    %v346 = vpop.xlane.xlu0 %345
    %v347 = vsel %vm343, %v295, -inf
    %348 = vmax.xlane.f32.xlu0 %v347
    %v349 = vpop.xlane.xlu0 %348
    %v350 = vsel %vm343, %v296, -inf
    %351 = vmax.xlane.f32.xlu0 %v350
    %v352 = vpop.xlane.xlu0 %351
    %v353 = vsel %vm343, %v297, -inf
    %354 = vmax.xlane.f32.xlu0 %v353
    %v355 = vpop.xlane.xlu0 %354
    %v356 = vsub.f32 %v294, %v346
    %v357 = vsub.f32 %v295, %v349
    %v358 = vsub.f32 %v296, %v352
    %v359 = vsub.f32 %v297, %v355
    %v360 = vmul.f32 %v356, 1.442695
    %v361 = vpow.pop %v360
    %v362 = vmul.f32 %v357, 1.442695
    %v363 = vpow.pop %v362
    %v364 = vmul.f32 %v358, 1.442695
    %v365 = vpow.pop %v364
    %v366 = vmul.f32 %v359, 1.442695
    %v367 = vpow.pop %v366
    %372 = vrot.lane.b32.xlu0 %v361, 124
    %v373 = vpop.permute.xlu0 %372
    %374 = vrot.lane.b32.xlu0 %v363, 124
    %v375 = vpop.permute.xlu0 %374
    %376 = vrot.lane.b32.xlu0 %v365, 124
    %v377 = vpop.permute.xlu0 %376
    %378 = vrot.lane.b32.xlu0 %v367, 124
    %v379 = vpop.permute.xlu0 %378
    %v384 = vsel %vm298, %v373, 0.0
    %385 = vadd.xlane.f32.xlu0 %v384
    %v386 = vpop.xlane.xlu0 %385
    %v387 = vsel %vm298, %v375, 0.0
    %388 = vadd.xlane.f32.xlu0 %v387
    %v389 = vpop.xlane.xlu0 %388
    %v390 = vsel %vm298, %v377, 0.0
    %391 = vadd.xlane.f32.xlu0 %v390
    %v392 = vpop.xlane.xlu0 %391
    %v393 = vsel %vm298, %v379, 0.0
    %394 = vadd.xlane.f32.xlu0 %v393
    %v395 = vpop.xlane.xlu0 %394
    %v396 = vrcp.pop %v386
    %v397 = vmul.f32 %v361, %v396
    %v398 = vrcp.pop %v389
    %v399 = vmul.f32 %v363, %v398
    %v400 = vrcp.pop %v392
    %v401 = vmul.f32 %v365, %v400
    %v402 = vrcp.pop %v395
    %v403 = vmul.f32 %v367, %v402
    %vm404 = vcmask 80960
    %v405 = vsel %vm404, %v294, -inf
    %v406 = vrot.slane %v405, 4
    %v407 = vmax.f32 %v405, %v406
    %v408 = vrot.slane %v407, 2
    %v409 = vmax.f32 %v407, %v408
    %v410 = vrot.slane %v409, 1
    %v411 = vmax.f32 %v409, %v410
    %v412 = vsel %vm404, %v295, -inf
    %v413 = vrot.slane %v412, 4
    %v414 = vmax.f32 %v412, %v413
    %v415 = vrot.slane %v414, 2
    %v416 = vmax.f32 %v414, %v415
    %v417 = vrot.slane %v416, 1
    %v418 = vmax.f32 %v416, %v417
    %v419 = vsel %vm404, %v296, -inf
    %v420 = vrot.slane %v419, 4
    %v421 = vmax.f32 %v419, %v420
    %v422 = vrot.slane %v421, 2
    %v423 = vmax.f32 %v421, %v422
    %v424 = vrot.slane %v423, 1
    %v425 = vmax.f32 %v423, %v424
    %v426 = vsel %vm404, %v297, -inf
    %v427 = vrot.slane %v426, 4
    %v428 = vmax.f32 %v426, %v427
    %v429 = vrot.slane %v428, 2
    %v430 = vmax.f32 %v428, %v429
    %v431 = vrot.slane %v430, 1
    %v432 = vmax.f32 %v430, %v431
    %v433 = vsub.f32 %v294, %v411
    %v434 = vsub.f32 %v295, %v418
    %v435 = vsub.f32 %v296, %v425
    %v436 = vsub.f32 %v297, %v432
    %v437 = vmul.f32 %v433, 1.442695
    %v438 = vpow.pop %v437
    %v439 = vmul.f32 %v434, 1.442695
    %v440 = vpow.pop %v439
    %v441 = vmul.f32 %v435, 1.442695
    %v442 = vpow.pop %v441
    %v443 = vmul.f32 %v436, 1.442695
    %v444 = vpow.pop %v443
    %v445 = vsel %vm404, %v438, 0.0
    %v446 = vrot.slane %v445, 4
    %v447 = vadd.f32 %v445, %v446
    %v448 = vrot.slane %v447, 2
    %v449 = vadd.f32 %v447, %v448
    %v450 = vrot.slane %v449, 1
    %v451 = vadd.f32 %v449, %v450
    %v452 = vsel %vm404, %v440, 0.0
    %v453 = vrot.slane %v452, 4
    %v454 = vadd.f32 %v452, %v453
    %v455 = vrot.slane %v454, 2
    %v456 = vadd.f32 %v454, %v455
    %v457 = vrot.slane %v456, 1
    %v458 = vadd.f32 %v456, %v457
    %v459 = vsel %vm404, %v442, 0.0
    %v460 = vrot.slane %v459, 4
    %v461 = vadd.f32 %v459, %v460
    %v462 = vrot.slane %v461, 2
    %v463 = vadd.f32 %v461, %v462
    %v464 = vrot.slane %v463, 1
    %v465 = vadd.f32 %v463, %v464
    %v466 = vsel %vm404, %v444, 0.0
    %v467 = vrot.slane %v466, 4
    %v468 = vadd.f32 %v466, %v467
    %v469 = vrot.slane %v468, 2
    %v470 = vadd.f32 %v468, %v469
    %v471 = vrot.slane %v470, 1
    %v472 = vadd.f32 %v470, %v471
    %v473 = vrcp.pop %v451
    %v474 = vmul.f32 %v438, %v473
    %v475 = vrcp.pop %v458
    %v476 = vmul.f32 %v440, %v475
    %v477 = vrcp.pop %v465
    %v478 = vmul.f32 %v442, %v477
    %v479 = vrcp.pop %v472
    %v480 = vmul.f32 %v444, %v479
    %v481 = vmul.f32 %v474, 0.5
    %v482 = vmul.f32 %v476, 0.5
    %v483 = vmul.f32 %v478, 0.5
    %v484 = vmul.f32 %v480, 0.5
    %489 = vrot.lane.b32.xlu0 %v481, 127
    %v490 = vpop.permute.xlu0 %489
    %491 = vrot.lane.b32.xlu0 %v482, 127
    %v492 = vpop.permute.xlu0 %491
    %493 = vrot.lane.b32.xlu0 %v483, 127
    %v494 = vpop.permute.xlu0 %493
    %495 = vrot.lane.b32.xlu0 %v484, 127
    %v496 = vpop.permute.xlu0 %495
    %v501 = vadd.f32 %v481, %v490
    %v502 = vadd.f32 %v482, %v492
    %v503 = vadd.f32 %v483, %v494
    %v504 = vadd.f32 %v484, %v496
    %v505 = vmul.f32 %v336, 0.5
    %v506 = vmul.f32 %v338, 0.5
    %v507 = vmul.f32 %v340, 0.5
    %v508 = vmul.f32 %v342, 0.5
    %v509 = vmul.f32 %v397, 0.5
    %v510 = vmul.f32 %v399, 0.5
    %v511 = vmul.f32 %v401, 0.5
    %v512 = vmul.f32 %v403, 0.5
    %517 = vrot.lane.b32.xlu0 %v509, 124
    %v518 = vpop.permute.xlu0 %517
    %519 = vrot.lane.b32.xlu0 %v510, 124
    %v520 = vpop.permute.xlu0 %519
    %521 = vrot.lane.b32.xlu0 %v511, 124
    %v522 = vpop.permute.xlu0 %521
    %523 = vrot.lane.b32.xlu0 %v512, 124
    %v524 = vpop.permute.xlu0 %523
    %v529 = vadd.f32 %v505, %v518
    %v530 = vadd.f32 %v506, %v520
    %v531 = vadd.f32 %v507, %v522
    %v532 = vadd.f32 %v508, %v524
    %534 = vset.pattern.permute.xlu0 8
    %535 = vperm.xlu0 %534, %v501
    %v536 = vpop.permute.xlu0 %535
    %539 = vset.pattern.permute.xlu0 8
    %540 = vperm.xlu0 %539, %v502
    %v541 = vpop.permute.xlu0 %540
    %544 = vset.pattern.permute.xlu0 8
    %545 = vperm.xlu0 %544, %v503
    %v546 = vpop.permute.xlu0 %545
    %549 = vset.pattern.permute.xlu0 8
    %550 = vperm.xlu0 %549, %v504
    %v551 = vpop.permute.xlu0 %550
    %v553 = vmul.f32 %v536, %v529
    %v554 = vmul.f32 %v541, %v530
    %v555 = vmul.f32 %v546, %v531
    %v556 = vmul.f32 %v551, %v532
    %v557 = vsel %vm298, %v553, 0.0
    %v558 = vrot.slane %v557, 4
    %v559 = vadd.f32 %v557, %v558
    %v560 = vrot.slane %v559, 2
    %v561 = vadd.f32 %v559, %v560
    %v562 = vrot.slane %v561, 1
    %v563 = vadd.f32 %v561, %v562
    %v564 = vsel %vm298, %v554, 0.0
    %v565 = vrot.slane %v564, 4
    %v566 = vadd.f32 %v564, %v565
    %v567 = vrot.slane %v566, 2
    %v568 = vadd.f32 %v566, %v567
    %v569 = vrot.slane %v568, 1
    %v570 = vadd.f32 %v568, %v569
    %v571 = vsel %vm298, %v555, 0.0
    %v572 = vrot.slane %v571, 4
    %v573 = vadd.f32 %v571, %v572
    %v574 = vrot.slane %v573, 2
    %v575 = vadd.f32 %v573, %v574
    %v576 = vrot.slane %v575, 1
    %v577 = vadd.f32 %v575, %v576
    %v578 = vsel %vm298, %v556, 0.0
    %v579 = vrot.slane %v578, 4
    %v580 = vadd.f32 %v578, %v579
    %v581 = vrot.slane %v580, 2
    %v582 = vadd.f32 %v580, %v581
    %v583 = vrot.slane %v582, 1
    %v584 = vadd.f32 %v582, %v583
    %585 = vst [vmem:[#allocation10] sm:$0xff] 0.0
    %vm590 = vcmask 1041409
    %v591 = vsel %vm590, %v570, %v563
    %vm592 = vcmask 1042434
    %v593 = vsel %vm592, %v577, %v591
    %vm594 = vcmask 1043459
    %v595 = vsel %vm594, %v584, %v593
    %vm597 = vcmask 27648
    %598 = vst.msk [vmem:[#allocation10] sm:$0xf] %vm597, %v595
    // Predicated region
    $region38: #{tpu_custom_call.1} parent=1 // pred_check
      _
    $region39: #{tpu_custom_call.1} parent=1 // pred_check_branch
      %600 = sbr.rel (0) target = $region41
    $region40: #{tpu_custom_call.1} parent=1 // pred_region
      %s602 = ssub.s32 128, 128
      %603 = vsyncadd [#allocation4], %s602
      %s605 = sshll.u32 [#allocation10], 4
      %s606 = int_to_ptr.vmem [resolvable:$true] %s605
      %608 = dma.vmem_to_hbm [thread:$0]  %s606, 128, %s5, [#allocation4]
    $region41: #{tpu_custom_call.1} parent=1 // pred_fallthru
      _
    // Predicated region
    $region42: #{tpu_custom_call.1} parent=1 // pred_check
      _
    $region43: #{tpu_custom_call.1} parent=1 // pred_check_branch
      %610 = sbr.rel (0) target = $region45
    $region44: #{tpu_custom_call.1} parent=1 // pred_region
      %611 = dma.done [#allocation4], 128
    $region45: #{tpu_custom_call.1} parent=1 // pred_fallthru
      _
    %612 = vsyncpa [#allocation3], 1
    %613 = vsyncpa [#allocation6], 1
    %614 = vsyncpa [#allocation9], 1
    %615 = vsyncpa [#allocation4], 1

</llo_original>
